<compile_context>
chip_gen: v5e
topology: v5e:2x2
jax: 0.10.0
libtpu: 0.0.40
codegen_flags: <defaults>
</compile_context>

<pallas_src>
from functools import partial

import numpy as np
import jax
import jax.numpy as jnp
from jax.experimental import pallas as pl
from jax.experimental.pallas import tpu as pltpu


# Tap order (dh, dw) == (kh-1, kw-1) row-major; matches the conv-weight column
# order and the precomputed mask row blocks.
_TAPS = tuple((dh, dw) for dh in (-1, 0, 1) for dw in (-1, 0, 1))


# ----------------------------------------------------------------------------
# Probe pltpu.roll's direction once (tiny kernel) so static shifts are exact.
# ----------------------------------------------------------------------------
def _probe_roll_semantics():
    """True iff pltpu.roll matches np.roll (out[:, p] = x[:, (p - shift) % S])."""
    def kern(x_ref, o_ref):
        o_ref[...] = pltpu.roll(x_ref[...], 1, axis=1)

    x = jnp.arange(8 * 128, dtype=jnp.float32).reshape(8, 128)
    out = np.asarray(jax.block_until_ready(
        pl.pallas_call(kern, out_shape=jax.ShapeDtypeStruct((8, 128),
                                                            jnp.float32))(x)))
    if out[0, 1] == 0.0 and out[0, 0] == 127.0:
        return True            # np.roll-like
    if out[0, 1] == 2.0 and out[0, 0] == 1.0:
        return False           # opposite convention
    raise RuntimeError("unexpected pltpu.roll semantics")


def _fetch_shift(S, shift, roll_np):
    """Roll amount so that out[:, p] = x[:, (p + shift) % S]."""
    return (-shift) % S if roll_np else shift % S


# ----------------------------------------------------------------------------
# In-kernel helpers (traced inside the Pallas kernel body)
# ----------------------------------------------------------------------------
def _conv3x3_relu(x, w_ref, b_ref, mask_ref, patches_ref, *, W, s, roll_np):
    """3x3 'same' conv at dilation s + bias + ReLU on a (8, S) f32 activation.

    w_ref:       (8, 80) bf16, columns (kh, kw, cin) + 8 zero-pad columns.
    b_ref:       (8, 1)  f32.
    mask_ref:    (72, S) f32 border-validity mask (8 cin rows per tap).
    patches_ref: (80, S) bf16 VMEM scratch (im2col matrix, K padded to 80).
    """
    S = x.shape[-1]
    pending = None
    j = 0
    for t, (dh, dw) in enumerate(_TAPS):
        shift = s * (dh * W + dw)              # tap value lives at position p+shift
        amt = _fetch_shift(S, shift, roll_np)
        piece = x if amt == 0 else pltpu.roll(x, amt, axis=1)
        if (dh, dw) != (0, 0):                 # center tap needs no border mask
            piece = piece * mask_ref[pl.ds(8 * t, 8), :]
        if pending is None:
            pending = piece
        else:                                  # aligned (16, S) bf16 tile store
            blk = jnp.concatenate([pending, piece], axis=0)
            patches_ref[pl.ds(16 * j, 16), :] = blk.astype(patches_ref.dtype)
            pending = None
            j += 1
    # last tap + zero pad rows 72..79 -> final aligned 16-row store
    blk = jnp.concatenate([pending, jnp.zeros_like(pending)], axis=0)
    patches_ref[pl.ds(16 * j, 16), :] = blk.astype(patches_ref.dtype)

    acc = jnp.dot(w_ref[...], patches_ref[...],
                  preferred_element_type=jnp.float32)          # (8, S) on the MXU
    return jnp.maximum(acc + b_ref[...], 0.0)


def _maxpool2x2_dilated(y, *, W, s, roll_np):
    """2x2 / stride-2 max pool at dilation s, kept dilated.

    Valid outputs live on the 2s-strided grid of the original plane; other
    positions hold finite garbage that is masked/zero-weighted downstream.
    """
    S = y.shape[-1]
    z = jnp.maximum(y, pltpu.roll(y, _fetch_shift(S, s, roll_np), axis=1))
    return jnp.maximum(z, pltpu.roll(z, _fetch_shift(S, s * W, roll_np), axis=1))


# ----------------------------------------------------------------------------
# Fused kernel (one grid step == one batch element)
# ----------------------------------------------------------------------------
def _tiny_vgg_kernel(x_ref, w1_ref, b1_ref, w2_ref, b2_ref, w3_ref, b3_ref,
                     w4_ref, b4_ref, m1_ref, m2_ref, wc_ref, bl_ref,
                     out_ref, patches_ref, *, W, out_dim, roll_np):
    x = x_ref[0]                                               # (8, S) f32

    conv = partial(_conv3x3_relu, patches_ref=patches_ref, W=W, roll_np=roll_np)

    # conv block 1 (dilation 1) + pool -> valid on stride-2 grid
    y = conv(x, w1_ref, b1_ref, m1_ref, s=1)
    y = conv(y, w2_ref, b2_ref, m1_ref, s=1)
    y = _maxpool2x2_dilated(y, W=W, s=1, roll_np=roll_np)

    # conv block 2 (dilation 2 on the stride-2 grid) + pool -> stride-4 grid
    y = conv(y, w3_ref, b3_ref, m2_ref, s=2)
    y = conv(y, w4_ref, b4_ref, m2_ref, s=2)
    y = _maxpool2x2_dilated(y, W=W, s=2, roll_np=roll_np)

    # Classifier: one (8, S) @ (S, 128) MXU matmul.  wc holds the Linear weight
    # scattered onto the stride-4 grid with channel c packed into lanes
    # [16c, 16c+16); off-grid rows are zero so dilated garbage never leaks.
    res = jnp.dot(y.astype(jnp.bfloat16), wc_ref[...],
                  preferred_element_type=jnp.float32)          # (8, 128), 1 vreg
    out16 = res[0:1, 0:16]
    for c in range(1, 8):                                      # diagonal block sum
        out16 = out16 + res[c:c + 1, 16 * c:16 * (c + 1)]
    out_ref[0] = (out16[:, :out_dim] + bl_ref[...]).astype(out_ref.dtype)


# ----------------------------------------------------------------------------
# Wrapper: layout plumbing only (padding, weight permutes, mask/weight scatter)
# ----------------------------------------------------------------------------
def _tap_border_masks(H, W, s):
    """(72, H*W) f32 0/1 masks: tap (dh,dw) at dilation s is inside the image."""
    p = np.arange(H * W)
    h, w = p // W, p % W
    rows = []
    for dh, dw in _TAPS:
        ok = np.ones(H * W, dtype=bool)
        if dh < 0:
            ok &= h >= s
        if dh > 0:
            ok &= h <= H - 2 * s
        if dw < 0:
            ok &= w >= s
        if dw > 0:
            ok &= w <= W - 2 * s
        rows.append(ok)
    m = np.stack(rows).astype(np.float32)                      # (9, H*W)
    return np.repeat(m, 8, axis=0)                             # (72, H*W)


def hand_sign_tiny_vgg_forward(x_nchw, params, *, roll_np=True):
    """Forward pass matching the PyTorch module.  x_nchw: (N, Cin, 64, 64)."""
    N, Cin, H, W = x_nchw.shape
    hidden = params["b1"].shape[0]
    out_dim = params["bl"].shape[0]
    S = H * W
    # Kernel is specialized to one 8-channel sublane group per activation.
    assert hidden == 8 and Cin <= 8 and out_dim <= 16
    assert H == 64 and W == 64, "classifier needs 64x64 input (hidden*16*16)"

    def conv_w(w):      # (Co, Ci, 3, 3) -> (Co, 80) bf16, cols (kh, kw, ci) + pad
        ci = w.shape[1]
        if ci < 8:
            w = jnp.pad(w, ((0, 0), (0, 8 - ci), (0, 0), (0, 0)))
        w = jnp.transpose(w, (0, 2, 3, 1)).reshape(w.shape[0], 72)
        return jnp.pad(w, ((0, 0), (0, 8))).astype(jnp.bfloat16)

    x_flat = x_nchw.reshape(N, Cin, S)
    if Cin < 8:                                   # pad Cin 3 -> 8 (aligned slabs)
        x_flat = jnp.pad(x_flat, ((0, 0), (0, 8 - Cin), (0, 0)))

    w1 = conv_w(params["w1"]); b1 = params["b1"].reshape(8, 1)
    w2 = conv_w(params["w2"]); b2 = params["b2"].reshape(8, 1)
    w3 = conv_w(params["w3"]); b3 = params["b3"].reshape(8, 1)
    w4 = conv_w(params["w4"]); b4 = params["b4"].reshape(8, 1)

    m1 = jnp.asarray(_tap_border_masks(H, W, 1))               # block-1 convs
    m2 = jnp.asarray(_tap_border_masks(H, W, 2))               # block-2 convs

    # Linear weight scattered onto the stride-4 dilated grid; lane = 16*c + o.
    wl4 = params["wl"].reshape(out_dim, 8, H // 4, W // 4)     # (O, C, 16, 16)
    wsc = jnp.zeros((8, H, W, 16), jnp.float32)
    wsc = wsc.at[:, ::4, ::4, :out_dim].set(jnp.transpose(wl4, (1, 2, 3, 0)))
    wcls = jnp.transpose(wsc, (1, 2, 0, 3)).reshape(S, 128).astype(jnp.bfloat16)
    bl = params["bl"].reshape(1, out_dim)

    out = pl.pallas_call(
        partial(_tiny_vgg_kernel, W=W, out_dim=out_dim, roll_np=roll_np),
        out_shape=jax.ShapeDtypeStruct((N, 1, out_dim), jnp.float32),
        grid_spec=pltpu.PrefetchScalarGridSpec(
            num_scalar_prefetch=0,
            grid=(N,),
            in_specs=[
                pl.BlockSpec((1, 8, S), lambda n: (n, 0, 0)),
                pl.BlockSpec((8, 80), lambda n: (0, 0)),
                pl.BlockSpec((8, 1), lambda n: (0, 0)),
                pl.BlockSpec((8, 80), lambda n: (0, 0)),
                pl.BlockSpec((8, 1), lambda n: (0, 0)),
                pl.BlockSpec((8, 80), lambda n: (0, 0)),
                pl.BlockSpec((8, 1), lambda n: (0, 0)),
                pl.BlockSpec((8, 80), lambda n: (0, 0)),
                pl.BlockSpec((8, 1), lambda n: (0, 0)),
                pl.BlockSpec((72, S), lambda n: (0, 0)),
                pl.BlockSpec((72, S), lambda n: (0, 0)),
                pl.BlockSpec((S, 128), lambda n: (0, 0)),
                pl.BlockSpec((1, out_dim), lambda n: (0, 0)),
            ],
            out_specs=pl.BlockSpec((1, 1, out_dim), lambda n: (n, 0, 0)),
            scratch_shapes=[pltpu.VMEM((80, S), jnp.bfloat16)],
        ),
        compiler_params=pltpu.CompilerParams(
            dimension_semantics=("parallel",)),
    )(x_flat, w1, b1, w2, b2, w3, b3, w4, b4, m1, m2, wcls, bl)
    return out.reshape(N, out_dim)


# ----------------------------------------------------------------------------
# Pure-JAX reference (correctness sanity check)
# ----------------------------------------------------------------------------
def _conv_ref(x_nhwc, w_pt, b):
    y = jax.lax.conv_general_dilated(
        x_nhwc, jnp.transpose(w_pt, (2, 3, 1, 0)),             # OIHW -> HWIO
        window_strides=(1, 1), padding=((1, 1), (1, 1)),
        dimension_numbers=("NHWC", "HWIO", "NHWC"))
    return y + b


def _maxpool_ref(x):
    return jax.lax.reduce_window(x, -jnp.inf, jax.lax.max,
                                 (1, 2, 2, 1), (1, 2, 2, 1), "VALID")


def reference_forward(x_nchw, P):
    x = jnp.transpose(x_nchw, (0, 2, 3, 1))
    x = jax.nn.relu(_conv_ref(x, P["w1"], P["b1"]))
    x = jax.nn.relu(_conv_ref(x, P["w2"], P["b2"]))
    x = _maxpool_ref(x)
    x = jax.nn.relu(_conv_ref(x, P["w3"], P["b3"]))
    x = jax.nn.relu(_conv_ref(x, P["w4"], P["b4"]))
    x = _maxpool_ref(x)
    x = jnp.transpose(x, (0, 3, 1, 2)).reshape(x.shape[0], -1)
    return x @ P["wl"].T + P["bl"]


# ----------------------------------------------------------------------------
# Main
# ----------------------------------------------------------------------------
if __name__ == "__main__":
    # Spatial must be 64 so that hidden_units * 16 * 16 matches the Linear.
    N, IN_CH, HIDDEN, OUT = 2, 3, 8, 10
    H = W = 64

    key = jax.random.PRNGKey(0)
    ks = jax.random.split(key, 11)

    def init_conv(kw, kb, cin, cout):
        w = jax.random.normal(kw, (cout, cin, 3, 3), jnp.float32) * 0.1
        b = jax.random.normal(kb, (cout,), jnp.float32) * 0.1
        return w, b

    w1, b1 = init_conv(ks[0], ks[1], IN_CH, HIDDEN)
    w2, b2 = init_conv(ks[2], ks[3], HIDDEN, HIDDEN)
    w3, b3 = init_conv(ks[4], ks[5], HIDDEN, HIDDEN)
    w4, b4 = init_conv(ks[6], ks[7], HIDDEN, HIDDEN)
    wl = jax.random.normal(ks[8], (OUT, HIDDEN * 16 * 16), jnp.float32) * 0.02
    bl = jax.random.normal(ks[9], (OUT,), jnp.float32) * 0.02
    params = dict(w1=w1, b1=b1, w2=w2, b2=b2, w3=w3, b3=b3, w4=w4, b4=b4,
                  wl=wl, bl=bl)

    x = jax.random.normal(ks[10], (N, IN_CH, H, W), jnp.float32)

    roll_np = _probe_roll_semantics()          # pin pltpu.roll direction

    fwd = jax.jit(partial(hand_sign_tiny_vgg_forward, roll_np=roll_np))
    out = jax.block_until_ready(fwd(x, params))
    assert out.shape == (N, OUT), out.shape

    ref = jax.block_until_ready(reference_forward(x, params))
    # MXU operands are bf16 (f32 accumulation), so allow bf16-level tolerance.
    np.testing.assert_allclose(np.asarray(out), np.asarray(ref),
                               rtol=2e-2, atol=3e-2)

    print("KERNEL_OK")
</pallas_src>

<mosaic_0001>
module attributes {stable_mosaic.version = 11 : i64} {
  func.func @kern(%arg0: memref<8x128xf32, #tpu.memory_space<vmem>>, %arg1: memref<8x128xf32, #tpu.memory_space<vmem>>) attributes {dimension_semantics = [], scalar_prefetch = 0 : i64, scratch_operands = 0 : i64, tpu.core_type = #tpu.core_type<tc>} {
    %c0 = arith.constant 0 : index
    %c0_0 = arith.constant 0 : index
    %0 = vector.load %arg0[%c0, %c0_0] : memref<8x128xf32, #tpu.memory_space<vmem>>, vector<8x128xf32>
    %c1_i32 = arith.constant 1 : i32
    %1 = tpu.dynamic_rotate %0 by %c1_i32 dim 1 : vector<8x128xf32>, i32 -> vector<8x128xf32>
    %c0_1 = arith.constant 0 : index
    %c0_2 = arith.constant 0 : index
    %2 = vector.load %arg1[%c0_1, %c0_2] : memref<8x128xf32, #tpu.memory_space<vmem>>, vector<8x128xf32>
    tpu.vector_store %arg1[%c0_1, %c0_2], %1 {strides = array<i32>} : memref<8x128xf32, #tpu.memory_space<vmem>>, vector<8x128xf32>,
    return
  }
}

</mosaic_0001>

<llo_original>
// kernel: tpu_custom_call.1
$region0: #{tpu_custom_call.1}
  #allocation0 [shape = 'u32[]', space=smem, size = 0x4, offset = 0x4, fixed_abs, tag = 'smem constant byte address 0x4 - core index']
  #allocation1 [shape = 'u32[72,128]{1,0:T(1,128)}', space=vmem, size = 0x9000, scoped, tag = 'internal scratch']
  %s0 = inlined_call_operand.hbm [shape: f32[8,128], index: 0, kind: input, shape index: {}]
  %s1 = inlined_call_operand.hbm [shape: f32[8,128], index: 1, kind: output, shape index: {}]
  %s2 = sld [smem:[#allocation0]]
  $region18: #{tpu_custom_call.1} parent=0
    _
  %s4 = ssub.s32 1, %s2
  %s5 = scalar_select 0, %s4, %s2
  $region1: #{tpu_custom_call.1} parent=0
    #allocation2 [shape = 'u8[4096]{0}', space=vmem, size = 0x1000, scoped, tag = 'input window, operand 0, single buffered']
    #allocation3 [shape = 's32[1]{0}', space=sflag, size = 0x4, scoped, tag = 'scoped memory for tpu_custom_call.1']
    #allocation4 [shape = 's32[1]{0}', space=sflag, size = 0x4, scoped, tag = 'scoped memory for tpu_custom_call.1']
    #allocation5 [shape = 'u8[4096]{0}', space=vmem, size = 0x1000, scoped, tag = 'output window, operand 0, single buffered']
    %6 = vsyncpa [#allocation3], 0
    %7 = vsyncpa [#allocation4], 0
    // Predicated region
    $region2: #{tpu_custom_call.1} parent=1 // pred_check
      _
    $region3: #{tpu_custom_call.1} parent=1 // pred_check_branch
      %9 = sbr.rel (0) target = $region5
    $region4: #{tpu_custom_call.1} parent=1 // pred_region
      %11 = vsyncadd [#allocation3], 0
      %s13 = sshll.u32 %s0, 4
      %s14 = int_to_ptr.hbm [resolvable:$true] %s13
      %s15 = sshll.u32 [#allocation2], 4
      %s16 = int_to_ptr.vmem [resolvable:$true] %s15
      %18 = dma.hbm_to_vmem [thread:$0]  %s14, 128, %s16, [#allocation3]
    $region5: #{tpu_custom_call.1} parent=1 // pred_fallthru
      _
    // Predicated region
    $region6: #{tpu_custom_call.1} parent=1 // pred_check
      _
    $region7: #{tpu_custom_call.1} parent=1 // pred_check_branch
      %20 = sbr.rel (0) target = $region9
    $region8: #{tpu_custom_call.1} parent=1 // pred_region
      %22 = dma.done [#allocation3], 128
    $region9: #{tpu_custom_call.1} parent=1 // pred_fallthru
      _
    %v23 = vld [vmem:[#allocation2] sm:$0xff]
    %24 = vrot.lane.b32.xlu0 %v23, 1
    %v25 = vpop.permute.xlu0 %24
    %26 = vst [vmem:[#allocation5] sm:$0xff] %v25
    // Predicated region
    $region10: #{tpu_custom_call.1} parent=1 // pred_check
      _
    $region11: #{tpu_custom_call.1} parent=1 // pred_check_branch
      %28 = sbr.rel (0) target = $region13
    $region12: #{tpu_custom_call.1} parent=1 // pred_region
      %30 = vsyncadd [#allocation4], 0
      %s32 = sshll.u32 [#allocation5], 4
      %s33 = int_to_ptr.vmem [resolvable:$true] %s32
      %s34 = sshll.u32 %s1, 4
      %s35 = int_to_ptr.hbm [resolvable:$true] %s34
      %37 = dma.vmem_to_hbm [thread:$0]  %s33, 128, %s35, [#allocation4]
    $region13: #{tpu_custom_call.1} parent=1 // pred_fallthru
      _
    // Predicated region
    $region14: #{tpu_custom_call.1} parent=1 // pred_check
      _
    $region15: #{tpu_custom_call.1} parent=1 // pred_check_branch
      %39 = sbr.rel (0) target = $region17
    $region16: #{tpu_custom_call.1} parent=1 // pred_region
      %41 = dma.done [#allocation4], 128
    $region17: #{tpu_custom_call.1} parent=1 // pred_fallthru
      _
    %42 = vsyncpa [#allocation3], 1
    %43 = vsyncpa [#allocation4], 1

</llo_original>
